<compile_context>
chip_gen: v7x
topology: tpu7x:2x2x1
jax: 0.10.0
libtpu: 0.0.40
codegen_flags: <defaults>
</compile_context>

<pallas_src>
import functools

import jax
import jax.numpy as jnp
from jax.experimental import pallas as pl
from jax.experimental.pallas import tpu as pltpu


def _elu(x):
    # PyTorch nn.ELU(alpha=1.0)
    return jnp.where(x > 0, x, jnp.exp(x) - 1.0)


def _twinned_mlp_kernel(num_layers, x_ref, *refs):
    """Fused MLP forward for one (twin, batch-tile) grid cell.

    refs = (w_0, b_0, w_1, b_1, ..., w_{L-1}, b_{L-1}, out_ref)
      x_ref : (TB, in_dim)            VMEM
      w_l   : (1, fan_in_l, fan_out_l) VMEM (twin axis already selected by BlockSpec)
      b_l   : (1, 1, fan_out_l)        VMEM
      out   : (1, TB, out_dim)         VMEM
    """
    out_ref = refs[-1]
    wb = refs[:-1]

    h = x_ref[...].astype(jnp.float32)
    for l in range(num_layers):
        w = wb[2 * l][0].astype(jnp.float32)        # (fan_in, fan_out)
        b = wb[2 * l + 1][0].astype(jnp.float32)    # (1, fan_out) -> broadcasts
        h = jnp.dot(h, w, preferred_element_type=jnp.float32) + b
        if l != num_layers - 1:                     # ELU on all hidden layers only
            h = _elu(h)
    out_ref[0] = h.astype(out_ref.dtype)


class TwinnedMLP:
    """Two independent MLP heads sharing one fused Pallas forward pass."""

    def __init__(self, input_dim, output_dim, hidden_units, *, key,
                 dtype=jnp.float32):
        self.sizes = [int(input_dim)] + list(hidden_units) + [int(output_dim)]
        self.num_layers = len(self.sizes) - 1
        self.dtype = dtype

        # Twin-stacked parameters: weights (2, fan_in, fan_out), biases (2, 1, fan_out).
        # Init mirrors nn.Linear's default U(-1/sqrt(fan_in), 1/sqrt(fan_in)).
        self.weights = []
        self.biases = []
        for fan_in, fan_out in zip(self.sizes[:-1], self.sizes[1:]):
            key, kw, kb = jax.random.split(key, 3)
            bound = 1.0 / (fan_in ** 0.5)
            w = jax.random.uniform(kw, (2, fan_in, fan_out), dtype=dtype,
                                   minval=-bound, maxval=bound)
            b = jax.random.uniform(kb, (2, 1, fan_out), dtype=dtype,
                                   minval=-bound, maxval=bound)
            self.weights.append(w)
            self.biases.append(b)

    def __call__(self, x: jax.Array):
        batch, in_dim = x.shape
        assert in_dim == self.sizes[0]
        out_dim = self.sizes[-1]

        # Batch tile: full batch when small; cap at 512 rows (sublane-aligned)
        # so large batches stay within the scoped VMEM budget on v7x (64 MiB
        # physical / 32 MiB default) while keeping the writeback pipelined.
        tb = batch if batch <= 512 else 512
        grid = (2, pl.cdiv(batch, tb))

        in_specs = [pl.BlockSpec((tb, in_dim), lambda n, i: (i, 0))]
        for fan_in, fan_out in zip(self.sizes[:-1], self.sizes[1:]):
            # Weights/biases depend only on the twin axis -> stay VMEM-resident
            # across all batch tiles of one twin.
            in_specs.append(
                pl.BlockSpec((1, fan_in, fan_out), lambda n, i: (n, 0, 0)))
            in_specs.append(
                pl.BlockSpec((1, 1, fan_out), lambda n, i: (n, 0, 0)))

        out_spec = pl.BlockSpec((1, tb, out_dim), lambda n, i: (n, i, 0))

        kernel = functools.partial(_twinned_mlp_kernel, self.num_layers)

        params = []
        for w, b in zip(self.weights, self.biases):
            params.extend((w, b))

        stacked = pl.pallas_call(
            kernel,
            out_shape=jax.ShapeDtypeStruct((2, batch, out_dim), x.dtype),
            grid=grid,
            in_specs=in_specs,
            out_specs=out_spec,
            compiler_params=pltpu.CompilerParams(
                dimension_semantics=("parallel", "parallel")),
        )(x, *params)

        return stacked[0], stacked[1]


def _ref_forward(x, weights, biases, twin):
    """Pure-JAX reference matching the PyTorch module."""
    h = x.astype(jnp.float32)
    num_layers = len(weights)
    for l in range(num_layers):
        h = h @ weights[l][twin].astype(jnp.float32) \
            + biases[l][twin, 0].astype(jnp.float32)
        if l != num_layers - 1:
            h = jnp.where(h > 0, h, jnp.exp(h) - 1.0)
    return h.astype(x.dtype)


if __name__ == "__main__":
    key = jax.random.PRNGKey(0)
    key, k_x, k_params = jax.random.split(key, 3)

    batch, input_dim, output_dim = 8, 32, 32
    hidden_units = [64, 64]

    x = jax.random.normal(k_x, (batch, input_dim), dtype=jnp.float32)

    module = TwinnedMLP(input_dim, output_dim, hidden_units, key=k_params)

    out1, out2 = module(x)
    jax.block_until_ready(out1)
    jax.block_until_ready(out2)

    # Shape / dtype checks.
    assert out1.shape == (batch, output_dim) and out2.shape == (batch, output_dim)
    assert out1.dtype == x.dtype and out2.dtype == x.dtype

    # Numerics vs. pure-JAX reference.
    ref1 = _ref_forward(x, module.weights, module.biases, 0)
    ref2 = _ref_forward(x, module.weights, module.biases, 1)
    assert jnp.allclose(out1, ref1, rtol=1e-5, atol=1e-5)
    assert jnp.allclose(out2, ref2, rtol=1e-5, atol=1e-5)
    # The twins must differ (independent weights).
    assert not bool(jnp.allclose(out1, out2))

    print("KERNEL_OK")
</pallas_src>

<mosaic_0001>
module attributes {stable_mosaic.version = 11 : i64} {
  func.func @_twinned_mlp_kernel(%arg0: i32, %arg1: i32, %arg2: memref<8x32xf32, #tpu.memory_space<vmem>>, %arg3: memref<1x32x64xf32, #tpu.memory_space<vmem>>, %arg4: memref<1x1x64xf32, #tpu.memory_space<vmem>>, %arg5: memref<1x64x64xf32, #tpu.memory_space<vmem>>, %arg6: memref<1x1x64xf32, #tpu.memory_space<vmem>>, %arg7: memref<1x64x32xf32, #tpu.memory_space<vmem>>, %arg8: memref<1x1x32xf32, #tpu.memory_space<vmem>>, %arg9: memref<1x8x32xf32, #tpu.memory_space<vmem>>) attributes {dimension_semantics = [#tpu.dimension_semantics<parallel>, #tpu.dimension_semantics<parallel>], iteration_bounds = array<i64: 2, 1>, scalar_prefetch = 0 : i64, scratch_operands = 0 : i64, tpu.core_type = #tpu.core_type<tc>, window_params = [{transform_indices = @transform_0, window_bounds = array<i64: 8, 32>}, {transform_indices = @transform_1, window_bounds = array<i64: 1, 32, 64>}, {transform_indices = @transform_2, window_bounds = array<i64: 1, 1, 64>}, {transform_indices = @transform_3, window_bounds = array<i64: 1, 64, 64>}, {transform_indices = @transform_4, window_bounds = array<i64: 1, 1, 64>}, {transform_indices = @transform_5, window_bounds = array<i64: 1, 64, 32>}, {transform_indices = @transform_6, window_bounds = array<i64: 1, 1, 32>}, {transform_indices = @transform_7, window_bounds = array<i64: 1, 8, 32>}]} {
    %c0 = arith.constant 0 : index
    %c0_0 = arith.constant 0 : index
    %0 = vector.load %arg2[%c0, %c0_0] : memref<8x32xf32, #tpu.memory_space<vmem>>, vector<8x32xf32>
    %c0_1 = arith.constant 0 : index
    %c0_2 = arith.constant 0 : index
    %c0_3 = arith.constant 0 : index
    %1 = vector.load %arg3[%c0_1, %c0_2, %c0_3] : memref<1x32x64xf32, #tpu.memory_space<vmem>>, vector<1x32x64xf32>
    %2 = vector.shape_cast %1 : vector<1x32x64xf32> to vector<32x64xf32>
    %c0_4 = arith.constant 0 : index
    %c0_5 = arith.constant 0 : index
    %c0_6 = arith.constant 0 : index
    %3 = vector.load %arg4[%c0_4, %c0_5, %c0_6] : memref<1x1x64xf32, #tpu.memory_space<vmem>>, vector<1x1x64xf32>
    %4 = vector.shape_cast %3 : vector<1x1x64xf32> to vector<1x64xf32>
    %cst = arith.constant dense<0.000000e+00> : vector<8x64xf32>
    %5 = tpu.matmul %0, %2, %cst {dimension_numbers = #tpu.dot_dimension_numbers<[1], [0], [0], [1], [0, 0, 1, 1], [], []>} : vector<8x32xf32>, vector<32x64xf32>, vector<8x64xf32> -> vector<8x64xf32>
    %6 = vector.broadcast %4 : vector<1x64xf32> to vector<8x64xf32>
    %7 = arith.addf %5, %6 : vector<8x64xf32>
    %cst_7 = arith.constant 0.000000e+00 : f32
    %8 = vector.broadcast %cst_7 : f32 to vector<8x64xf32>
    %9 = arith.cmpf ogt, %7, %8 : vector<8x64xf32>
    %10 = math.exp %7 : vector<8x64xf32>
    %cst_8 = arith.constant 1.000000e+00 : f32
    %11 = vector.broadcast %cst_8 : f32 to vector<8x64xf32>
    %12 = arith.subf %10, %11 : vector<8x64xf32>
    %13 = arith.select %9, %7, %12 : vector<8x64xi1>, vector<8x64xf32>
    %c0_9 = arith.constant 0 : index
    %c0_10 = arith.constant 0 : index
    %c0_11 = arith.constant 0 : index
    %14 = vector.load %arg5[%c0_9, %c0_10, %c0_11] : memref<1x64x64xf32, #tpu.memory_space<vmem>>, vector<1x64x64xf32>
    %15 = vector.shape_cast %14 : vector<1x64x64xf32> to vector<64x64xf32>
    %c0_12 = arith.constant 0 : index
    %c0_13 = arith.constant 0 : index
    %c0_14 = arith.constant 0 : index
    %16 = vector.load %arg6[%c0_12, %c0_13, %c0_14] : memref<1x1x64xf32, #tpu.memory_space<vmem>>, vector<1x1x64xf32>
    %17 = vector.shape_cast %16 : vector<1x1x64xf32> to vector<1x64xf32>
    %cst_15 = arith.constant dense<0.000000e+00> : vector<8x64xf32>
    %18 = tpu.matmul %13, %15, %cst_15 {dimension_numbers = #tpu.dot_dimension_numbers<[1], [0], [0], [1], [0, 0, 1, 1], [], []>} : vector<8x64xf32>, vector<64x64xf32>, vector<8x64xf32> -> vector<8x64xf32>
    %19 = vector.broadcast %17 : vector<1x64xf32> to vector<8x64xf32>
    %20 = arith.addf %18, %19 : vector<8x64xf32>
    %cst_16 = arith.constant 0.000000e+00 : f32
    %21 = vector.broadcast %cst_16 : f32 to vector<8x64xf32>
    %22 = arith.cmpf ogt, %20, %21 : vector<8x64xf32>
    %23 = math.exp %20 : vector<8x64xf32>
    %cst_17 = arith.constant 1.000000e+00 : f32
    %24 = vector.broadcast %cst_17 : f32 to vector<8x64xf32>
    %25 = arith.subf %23, %24 : vector<8x64xf32>
    %26 = arith.select %22, %20, %25 : vector<8x64xi1>, vector<8x64xf32>
    %c0_18 = arith.constant 0 : index
    %c0_19 = arith.constant 0 : index
    %c0_20 = arith.constant 0 : index
    %27 = vector.load %arg7[%c0_18, %c0_19, %c0_20] : memref<1x64x32xf32, #tpu.memory_space<vmem>>, vector<1x64x32xf32>
    %28 = vector.shape_cast %27 : vector<1x64x32xf32> to vector<64x32xf32>
    %c0_21 = arith.constant 0 : index
    %c0_22 = arith.constant 0 : index
    %c0_23 = arith.constant 0 : index
    %29 = vector.load %arg8[%c0_21, %c0_22, %c0_23] : memref<1x1x32xf32, #tpu.memory_space<vmem>>, vector<1x1x32xf32>
    %30 = vector.shape_cast %29 : vector<1x1x32xf32> to vector<1x32xf32>
    %cst_24 = arith.constant dense<0.000000e+00> : vector<8x32xf32>
    %31 = tpu.matmul %26, %28, %cst_24 {dimension_numbers = #tpu.dot_dimension_numbers<[1], [0], [0], [1], [0, 0, 1, 1], [], []>} : vector<8x64xf32>, vector<64x32xf32>, vector<8x32xf32> -> vector<8x32xf32>
    %32 = vector.broadcast %30 : vector<1x32xf32> to vector<8x32xf32>
    %33 = arith.addf %31, %32 : vector<8x32xf32>
    %c0_25 = arith.constant 0 : index
    %c0_26 = arith.constant 0 : index
    %c0_27 = arith.constant 0 : index
    %34 = vector.load %arg9[%c0_25, %c0_26, %c0_27] : memref<1x8x32xf32, #tpu.memory_space<vmem>>, vector<1x8x32xf32>
    %35 = vector.shape_cast %34 : vector<1x8x32xf32> to vector<8x32xf32>
    %36 = vector.shape_cast %33 : vector<8x32xf32> to vector<1x8x32xf32>
    tpu.vector_store %arg9[%c0_25, %c0_26, %c0_27], %36 {strides = array<i32>} : memref<1x8x32xf32, #tpu.memory_space<vmem>>, vector<1x8x32xf32>,
    return
  }
  func.func @transform_0(%arg0: i32, %arg1: i32) -> (i32, i32) {
    %c0_i32 = arith.constant 0 : i32
    %c0_i32_0 = arith.constant 0 : i32
    return %arg1, %c0_i32 : i32, i32
  }
  func.func @transform_1(%arg0: i32, %arg1: i32) -> (i32, i32, i32) {
    %c0_i32 = arith.constant 0 : i32
    %c0_i32_0 = arith.constant 0 : i32
    %c0_i32_1 = arith.constant 0 : i32
    return %arg0, %c0_i32, %c0_i32_0 : i32, i32, i32
  }
  func.func @transform_2(%arg0: i32, %arg1: i32) -> (i32, i32, i32) {
    %c0_i32 = arith.constant 0 : i32
    %c0_i32_0 = arith.constant 0 : i32
    %c0_i32_1 = arith.constant 0 : i32
    return %arg0, %c0_i32, %c0_i32_0 : i32, i32, i32
  }
  func.func @transform_3(%arg0: i32, %arg1: i32) -> (i32, i32, i32) {
    %c0_i32 = arith.constant 0 : i32
    %c0_i32_0 = arith.constant 0 : i32
    %c0_i32_1 = arith.constant 0 : i32
    return %arg0, %c0_i32, %c0_i32_0 : i32, i32, i32
  }
  func.func @transform_4(%arg0: i32, %arg1: i32) -> (i32, i32, i32) {
    %c0_i32 = arith.constant 0 : i32
    %c0_i32_0 = arith.constant 0 : i32
    %c0_i32_1 = arith.constant 0 : i32
    return %arg0, %c0_i32, %c0_i32_0 : i32, i32, i32
  }
  func.func @transform_5(%arg0: i32, %arg1: i32) -> (i32, i32, i32) {
    %c0_i32 = arith.constant 0 : i32
    %c0_i32_0 = arith.constant 0 : i32
    %c0_i32_1 = arith.constant 0 : i32
    return %arg0, %c0_i32, %c0_i32_0 : i32, i32, i32
  }
  func.func @transform_6(%arg0: i32, %arg1: i32) -> (i32, i32, i32) {
    %c0_i32 = arith.constant 0 : i32
    %c0_i32_0 = arith.constant 0 : i32
    %c0_i32_1 = arith.constant 0 : i32
    return %arg0, %c0_i32, %c0_i32_0 : i32, i32, i32
  }
  func.func @transform_7(%arg0: i32, %arg1: i32) -> (i32, i32, i32) {
    %c0_i32 = arith.constant 0 : i32
    %c0_i32_0 = arith.constant 0 : i32
    return %arg0, %arg1, %c0_i32 : i32, i32, i32
  }
}

</mosaic_0001>

<llo_original>
// kernel: tpu_custom_call.1
$region0: #{tpu_custom_call.1}
  #allocation0 [shape = 'u32[]', space=smem, size = 0x4, offset = 0x4, fixed_abs, tag = 'smem constant byte address 0x4 - core index']
  #allocation1 [shape = 'u32[144,128]{1,0:T(1,128)}', space=vmem, size = 0x12000, scoped, tag = 'internal scratch']
  %s0 = inlined_call_operand.vmem [shape: f32[8,32], index: 0, kind: input, shape index: {}]
  %s1 = inlined_call_operand.vmem [shape: f32[2,32,64], index: 1, kind: input, shape index: {}]
  %s2 = inlined_call_operand.vmem [shape: f32[2,1,64], index: 2, kind: input, shape index: {}]
  %s3 = inlined_call_operand.vmem [shape: f32[2,64,64], index: 3, kind: input, shape index: {}]
  %s4 = inlined_call_operand.vmem [shape: f32[2,1,64], index: 4, kind: input, shape index: {}]
  %s5 = inlined_call_operand.vmem [shape: f32[2,64,32], index: 5, kind: input, shape index: {}]
  %s6 = inlined_call_operand.vmem [shape: f32[2,1,32], index: 6, kind: input, shape index: {}]
  %s7 = inlined_call_operand.hbm [shape: f32[2,8,32], index: 7, kind: output, shape index: {}]
  %s8 = sld [smem:[#allocation0]]
  $region61: #{tpu_custom_call.1} parent=0
    _
  %s10 = ssub.s32 1, %s8
  %s11 = scalar_select 0, %s10, %s8
  $region1: #{tpu_custom_call.1} parent=0
    #allocation2 [shape = 'u8[8192]{0}', space=vmem, size = 0x2000, scoped, tag = 'output window, operand 0']
    #allocation3 [shape = 's32[2]{0}', space=sflag, size = 0x8, scoped, tag = 'scoped memory for tpu_custom_call.1']
    %12 = vsyncpa [#allocation3], 0
    %s13 = scalar_lea.sflag [#allocation3], 1
    %14 = vsyncpa %s13, 0
    loop: start=0, step=1, limit=4
    $region2: #{tpu_custom_call.1} parent=1 // loop_pre_header
      _
    $region3: #{tpu_custom_call.1} parent=1 // loop_header
      %s16 = sphi 0, %s20
      %p17 = scmp.ge.s32.totalorder %s16, 4
      %s23 = sphi 0, %s35
      %s24 = sphi 0, %s31
      %s25 = sphi 0, %s23
      %s26 = sphi 0, %s24
      %s27 = sphi 0, %s25
      %s28 = sphi 0, %s26
      %s38 = sphi 0, %s40
      %s41 = sphi 0, %s38
      %s42 = sphi 0, %s41
      %s58 = sphi 0, %s42
      %s64 = sphi 0, %s66
      %s67 = sphi 0, %s64
      %s68 = sphi 0, %s67
      %s84 = sphi 0, %s68
      %s90 = sphi 0, %s92
      %s93 = sphi 0, %s90
      %s94 = sphi 0, %s93
      %s110 = sphi 0, %s94
      %s116 = sphi 0, %s118
      %s119 = sphi 0, %s116
      %s120 = sphi 0, %s119
      %s136 = sphi 0, %s120
      %s142 = sphi 0, %s144
      %s145 = sphi 0, %s142
      %s146 = sphi 0, %s145
      %s162 = sphi 0, %s146
      %s168 = sphi 0, %s170
      %s171 = sphi 0, %s168
      %s172 = sphi 0, %s171
      %s188 = sphi 0, %s172
      %s194 = sphi 0, %s196
      %s197 = sphi 0, %s194
      %s198 = sphi 0, %s197
      %s214 = sphi 0, %s198
      %s222 = sphi 0, %s224
      %s225 = sphi 0, %s222
      %s226 = sphi 0, %s225
      %s242 = sphi 0, %s226
    $region4: #{tpu_custom_call.1} parent=1 // loop_header_branch
      %19 = sbr.rel (%p17) target = $region8
    $region5: #{tpu_custom_call.1} parent=1 // loop_body
      %s21 = ssub.s32 %s16, 1
      %s22 = ssub.s32 %s16, 2
      %s29 = sadd.s32 1, %s24
      %p30 = scmp.ge.s32.totalorder %s29, 1
      %s31 = scalar_select %p30, 0, %s29
      %s32 = sadd.s32 1, %s23
      %s33 = scalar_select %p30, %s32, %s23
      %p34 = scmp.ge.s32.totalorder %s33, 2
      %s35 = scalar_select %p34, 0, %s33
      %s36 = ssub.s32 %s24, %s31
      %p37 = scmp.eq.s32.totalorder %s36, 0
      %s39 = sadd.s32 %s38, 1
      %s40 = scalar_select %p37, %s38, %s39
      %p43 = pneg %p37
      %p44 = scmp.eq.s32.totalorder %s16, 1
      %p45 = por %p43, %p44
      %p46 = scmp.ne.s32.totalorder %s38, %s41
      %p47 = scmp.eq.s32.totalorder %s16, 0
      %p48 = por %p46, %p47
      %p49 = scmp.ne.s32.totalorder %s38, %s41
      %p50 = scmp.eq.s32.totalorder %s21, 1
      %p51 = por %p49, %p50
      %p52 = scmp.ne.s32.totalorder %s41, %s42
      %p53 = scmp.eq.s32.totalorder %s21, 0
      %p54 = por %p52, %p53
      %p55 = scmp.ne.s32.totalorder %s41, %s42
      %p56 = scmp.eq.s32.totalorder %s22, 1
      %p57 = por %p55, %p56
      %p59 = scmp.ne.s32.totalorder %s42, %s58
      %p60 = scmp.eq.s32.totalorder %s22, 0
      %p61 = por %p59, %p60
      %s62 = ssub.s32 %s23, %s35
      %p63 = scmp.eq.s32.totalorder %s62, 0
      %s65 = sadd.s32 %s64, 1
      %s66 = scalar_select %p63, %s64, %s65
      %p69 = pneg %p63
      %p70 = scmp.eq.s32.totalorder %s16, 1
      %p71 = por %p69, %p70
      %p72 = scmp.ne.s32.totalorder %s64, %s67
      %p73 = scmp.eq.s32.totalorder %s16, 0
      %p74 = por %p72, %p73
      %p75 = scmp.ne.s32.totalorder %s64, %s67
      %p76 = scmp.eq.s32.totalorder %s21, 1
      %p77 = por %p75, %p76
      %p78 = scmp.ne.s32.totalorder %s67, %s68
      %p79 = scmp.eq.s32.totalorder %s21, 0
      %p80 = por %p78, %p79
      %p81 = scmp.ne.s32.totalorder %s67, %s68
      %p82 = scmp.eq.s32.totalorder %s22, 1
      %p83 = por %p81, %p82
      %p85 = scmp.ne.s32.totalorder %s68, %s84
      %p86 = scmp.eq.s32.totalorder %s22, 0
      %p87 = por %p85, %p86
      %s88 = ssub.s32 %s23, %s35
      %p89 = scmp.eq.s32.totalorder %s88, 0
      %s91 = sadd.s32 %s90, 1
      %s92 = scalar_select %p89, %s90, %s91
      %p95 = pneg %p89
      %p96 = scmp.eq.s32.totalorder %s16, 1
      %p97 = por %p95, %p96
      %p98 = scmp.ne.s32.totalorder %s90, %s93
      %p99 = scmp.eq.s32.totalorder %s16, 0
      %p100 = por %p98, %p99
      %p101 = scmp.ne.s32.totalorder %s90, %s93
      %p102 = scmp.eq.s32.totalorder %s21, 1
      %p103 = por %p101, %p102
      %p104 = scmp.ne.s32.totalorder %s93, %s94
      %p105 = scmp.eq.s32.totalorder %s21, 0
      %p106 = por %p104, %p105
      %p107 = scmp.ne.s32.totalorder %s93, %s94
      %p108 = scmp.eq.s32.totalorder %s22, 1
      %p109 = por %p107, %p108
      %p111 = scmp.ne.s32.totalorder %s94, %s110
      %p112 = scmp.eq.s32.totalorder %s22, 0
      %p113 = por %p111, %p112
      %s114 = ssub.s32 %s23, %s35
      %p115 = scmp.eq.s32.totalorder %s114, 0
      %s117 = sadd.s32 %s116, 1
      %s118 = scalar_select %p115, %s116, %s117
      %p121 = pneg %p115
      %p122 = scmp.eq.s32.totalorder %s16, 1
      %p123 = por %p121, %p122
      %p124 = scmp.ne.s32.totalorder %s116, %s119
      %p125 = scmp.eq.s32.totalorder %s16, 0
      %p126 = por %p124, %p125
      %p127 = scmp.ne.s32.totalorder %s116, %s119
      %p128 = scmp.eq.s32.totalorder %s21, 1
      %p129 = por %p127, %p128
      %p130 = scmp.ne.s32.totalorder %s119, %s120
      %p131 = scmp.eq.s32.totalorder %s21, 0
      %p132 = por %p130, %p131
      %p133 = scmp.ne.s32.totalorder %s119, %s120
      %p134 = scmp.eq.s32.totalorder %s22, 1
      %p135 = por %p133, %p134
      %p137 = scmp.ne.s32.totalorder %s120, %s136
      %p138 = scmp.eq.s32.totalorder %s22, 0
      %p139 = por %p137, %p138
      %s140 = ssub.s32 %s23, %s35
      %p141 = scmp.eq.s32.totalorder %s140, 0
      %s143 = sadd.s32 %s142, 1
      %s144 = scalar_select %p141, %s142, %s143
      %p147 = pneg %p141
      %p148 = scmp.eq.s32.totalorder %s16, 1
      %p149 = por %p147, %p148
      %p150 = scmp.ne.s32.totalorder %s142, %s145
      %p151 = scmp.eq.s32.totalorder %s16, 0
      %p152 = por %p150, %p151
      %p153 = scmp.ne.s32.totalorder %s142, %s145
      %p154 = scmp.eq.s32.totalorder %s21, 1
      %p155 = por %p153, %p154
      %p156 = scmp.ne.s32.totalorder %s145, %s146
      %p157 = scmp.eq.s32.totalorder %s21, 0
      %p158 = por %p156, %p157
      %p159 = scmp.ne.s32.totalorder %s145, %s146
      %p160 = scmp.eq.s32.totalorder %s22, 1
      %p161 = por %p159, %p160
      %p163 = scmp.ne.s32.totalorder %s146, %s162
      %p164 = scmp.eq.s32.totalorder %s22, 0
      %p165 = por %p163, %p164
      %s166 = ssub.s32 %s23, %s35
      %p167 = scmp.eq.s32.totalorder %s166, 0
      %s169 = sadd.s32 %s168, 1
      %s170 = scalar_select %p167, %s168, %s169
      %p173 = pneg %p167
      %p174 = scmp.eq.s32.totalorder %s16, 1
      %p175 = por %p173, %p174
      %p176 = scmp.ne.s32.totalorder %s168, %s171
      %p177 = scmp.eq.s32.totalorder %s16, 0
      %p178 = por %p176, %p177
      %p179 = scmp.ne.s32.totalorder %s168, %s171
      %p180 = scmp.eq.s32.totalorder %s21, 1
      %p181 = por %p179, %p180
      %p182 = scmp.ne.s32.totalorder %s171, %s172
      %p183 = scmp.eq.s32.totalorder %s21, 0
      %p184 = por %p182, %p183
      %p185 = scmp.ne.s32.totalorder %s171, %s172
      %p186 = scmp.eq.s32.totalorder %s22, 1
      %p187 = por %p185, %p186
      %p189 = scmp.ne.s32.totalorder %s172, %s188
      %p190 = scmp.eq.s32.totalorder %s22, 0
      %p191 = por %p189, %p190
      %s192 = ssub.s32 %s23, %s35
      %p193 = scmp.eq.s32.totalorder %s192, 0
      %s195 = sadd.s32 %s194, 1
      %s196 = scalar_select %p193, %s194, %s195
      %p199 = pneg %p193
      %p200 = scmp.eq.s32.totalorder %s16, 1
      %p201 = por %p199, %p200
      %p202 = scmp.ne.s32.totalorder %s194, %s197
      %p203 = scmp.eq.s32.totalorder %s16, 0
      %p204 = por %p202, %p203
      %p205 = scmp.ne.s32.totalorder %s194, %s197
      %p206 = scmp.eq.s32.totalorder %s21, 1
      %p207 = por %p205, %p206
      %p208 = scmp.ne.s32.totalorder %s197, %s198
      %p209 = scmp.eq.s32.totalorder %s21, 0
      %p210 = por %p208, %p209
      %p211 = scmp.ne.s32.totalorder %s197, %s198
      %p212 = scmp.eq.s32.totalorder %s22, 1
      %p213 = por %p211, %p212
      %p215 = scmp.ne.s32.totalorder %s198, %s214
      %p216 = scmp.eq.s32.totalorder %s22, 0
      %p217 = por %p215, %p216
      %s218 = ssub.s32 %s23, %s35
      %s219 = ssub.s32 %s24, %s31
      %s220 = sor.u32 %s218, %s219
      %p221 = scmp.eq.s32.totalorder %s220, 0
      %s223 = sadd.s32 %s222, 1
      %s224 = scalar_select %p221, %s222, %s223
      %p227 = pneg %p221
      %p228 = scmp.eq.s32.totalorder %s16, 1
      %p229 = por %p227, %p228
      %p230 = scmp.ne.s32.totalorder %s222, %s225
      %p231 = scmp.eq.s32.totalorder %s16, 0
      %p232 = por %p230, %p231
      %p233 = scmp.ne.s32.totalorder %s222, %s225
      %p234 = scmp.eq.s32.totalorder %s21, 1
      %p235 = por %p233, %p234
      %p236 = scmp.ne.s32.totalorder %s225, %s226
      %p237 = scmp.eq.s32.totalorder %s21, 0
      %p238 = por %p236, %p237
      %p239 = scmp.ne.s32.totalorder %s225, %s226
      %p240 = scmp.eq.s32.totalorder %s22, 1
      %p241 = por %p239, %p240
      %p243 = scmp.ne.s32.totalorder %s226, %s242
      %p244 = scmp.eq.s32.totalorder %s22, 0
      %p245 = por %p243, %p244
      %p246 = scmp.le.s32.totalorder 1, %s16
      %p247 = scmp.lt.s32.totalorder %s16, 3
      %p248 = pnand %p246, %p247
      %p249 = pneg %p248
      // Predicated region
      $region9: #{tpu_custom_call.1} parent=5 // pred_check
        _
      $region10: #{tpu_custom_call.1} parent=5 // pred_check_branch
        %251 = sbr.rel (%p248) target = $region12
      $region11: #{tpu_custom_call.1} parent=5 // pred_region
        %s252 = ssub.s32 %s16, 1
        // Predicated region
        $region13: #{tpu_custom_call.1} parent=11 // pred_check
          %p253 = pneg %p54
        $region14: #{tpu_custom_call.1} parent=11 // pred_check_branch
          %255 = sbr.rel (%p253) target = $region16
        $region15: #{tpu_custom_call.1} parent=11 // pred_region
          %p256 = scmp.lt.s32.totalorder %s26, 0
          %s257 = scalar_select %p256, %s26, 0
          %s258 = smul.addr %s257, 8
          %s259 = scalar_lea.vmem %s0, %s258
        $region16: #{tpu_custom_call.1} parent=11 // pred_fallthru
          _
      $region12: #{tpu_custom_call.1} parent=5 // pred_fallthru
        _
      %p260 = scmp.lt.s32.totalorder %s16, 2
      // Predicated region
      $region17: #{tpu_custom_call.1} parent=5 // pred_check
        %p261 = pneg %p260
      $region18: #{tpu_custom_call.1} parent=5 // pred_check_branch
        %263 = sbr.rel (%p261) target = $region20
      $region19: #{tpu_custom_call.1} parent=5 // pred_region
        // Predicated region
        $region21: #{tpu_custom_call.1} parent=19 // pred_check
          %p264 = pneg %p74
        $region22: #{tpu_custom_call.1} parent=19 // pred_check_branch
          %266 = sbr.rel (%p264) target = $region24
        $region23: #{tpu_custom_call.1} parent=19 // pred_region
          %p267 = scmp.lt.s32.totalorder %s23, 1
          %s268 = scalar_select %p267, %s23, 1
          %s269 = smul.addr %s268, 4
          %s270 = smul.addr %s269, 8
          %s271 = scalar_lea.vmem %s1, %s270
        $region24: #{tpu_custom_call.1} parent=19 // pred_fallthru
          _
        // Predicated region
        $region25: #{tpu_custom_call.1} parent=19 // pred_check
          %p272 = pneg %p100
        $region26: #{tpu_custom_call.1} parent=19 // pred_check_branch
          %274 = sbr.rel (%p272) target = $region28
        $region27: #{tpu_custom_call.1} parent=19 // pred_region
          %p275 = scmp.lt.s32.totalorder %s23, 1
          %s276 = scalar_select %p275, %s23, 1
          %s277 = scalar_lea.vmem %s2, %s276
        $region28: #{tpu_custom_call.1} parent=19 // pred_fallthru
          _
        // Predicated region
        $region29: #{tpu_custom_call.1} parent=19 // pred_check
          %p278 = pneg %p126
        $region30: #{tpu_custom_call.1} parent=19 // pred_check_branch
          %280 = sbr.rel (%p278) target = $region32
        $region31: #{tpu_custom_call.1} parent=19 // pred_region
          %p281 = scmp.lt.s32.totalorder %s23, 1
          %s282 = scalar_select %p281, %s23, 1
          %s283 = smul.addr %s282, 8
          %s284 = smul.addr %s283, 8
          %s285 = scalar_lea.vmem %s3, %s284
        $region32: #{tpu_custom_call.1} parent=19 // pred_fallthru
          _
        // Predicated region
        $region33: #{tpu_custom_call.1} parent=19 // pred_check
          %p286 = pneg %p152
        $region34: #{tpu_custom_call.1} parent=19 // pred_check_branch
          %288 = sbr.rel (%p286) target = $region36
        $region35: #{tpu_custom_call.1} parent=19 // pred_region
          %p289 = scmp.lt.s32.totalorder %s23, 1
          %s290 = scalar_select %p289, %s23, 1
          %s291 = scalar_lea.vmem %s4, %s290
        $region36: #{tpu_custom_call.1} parent=19 // pred_fallthru
          _
        // Predicated region
        $region37: #{tpu_custom_call.1} parent=19 // pred_check
          %p292 = pneg %p178
        $region38: #{tpu_custom_call.1} parent=19 // pred_check_branch
          %294 = sbr.rel (%p292) target = $region40
        $region39: #{tpu_custom_call.1} parent=19 // pred_region
          %p295 = scmp.lt.s32.totalorder %s23, 1
          %s296 = scalar_select %p295, %s23, 1
          %s297 = smul.addr %s296, 8
          %s298 = smul.addr %s297, 8
          %s299 = scalar_lea.vmem %s5, %s298
        $region40: #{tpu_custom_call.1} parent=19 // pred_fallthru
          _
        // Predicated region
        $region41: #{tpu_custom_call.1} parent=19 // pred_check
          %p300 = pneg %p204
        $region42: #{tpu_custom_call.1} parent=19 // pred_check_branch
          %302 = sbr.rel (%p300) target = $region44
        $region43: #{tpu_custom_call.1} parent=19 // pred_region
          %p303 = scmp.lt.s32.totalorder %s23, 1
          %s304 = scalar_select %p303, %s23, 1
          %s305 = scalar_lea.vmem %s6, %s304
        $region44: #{tpu_custom_call.1} parent=19 // pred_fallthru
          _
      $region20: #{tpu_custom_call.1} parent=5 // pred_fallthru
        _
      %p306 = scmp.le.s32.totalorder 1, %s16
      %p307 = scmp.lt.s32.totalorder %s16, 3
      %p308 = pnand %p306, %p307
      %p309 = pneg %p308
      // Predicated region
      $region45: #{tpu_custom_call.1} parent=5 // pred_check
        _
      $region46: #{tpu_custom_call.1} parent=5 // pred_check_branch
        %311 = sbr.rel (%p308) target = $region48
      $region47: #{tpu_custom_call.1} parent=5 // pred_region
        %s312 = ssub.s32 %s16, 1
        %p313 = scmp.lt.s32.totalorder %s26, 0
        %s314 = scalar_select %p313, %s26, 0
        %s315 = smul.addr %s314, 8
        %s316 = scalar_lea.vmem %s0, %s315
        %p317 = pneg %p54
        %p318 = pneg %p51
        %p319 = scmp.lt.s32.totalorder %s25, 1
        %s320 = scalar_select %p319, %s25, 1
        %s321 = smul.addr %s320, 4
        %s322 = smul.addr %s321, 8
        %s323 = scalar_lea.vmem %s1, %s322
        %p324 = pneg %p80
        %p325 = pneg %p77
        %p326 = scmp.lt.s32.totalorder %s25, 1
        %s327 = scalar_select %p326, %s25, 1
        %s328 = scalar_lea.vmem %s2, %s327
        %p329 = pneg %p106
        %p330 = pneg %p103
        %p331 = scmp.lt.s32.totalorder %s25, 1
        %s332 = scalar_select %p331, %s25, 1
        %s333 = smul.addr %s332, 8
        %s334 = smul.addr %s333, 8
        %s335 = scalar_lea.vmem %s3, %s334
        %p336 = pneg %p132
        %p337 = pneg %p129
        %p338 = scmp.lt.s32.totalorder %s25, 1
        %s339 = scalar_select %p338, %s25, 1
        %s340 = scalar_lea.vmem %s4, %s339
        %p341 = pneg %p158
        %p342 = pneg %p155
        %p343 = scmp.lt.s32.totalorder %s25, 1
        %s344 = scalar_select %p343, %s25, 1
        %s345 = smul.addr %s344, 8
        %s346 = smul.addr %s345, 8
        %s347 = scalar_lea.vmem %s5, %s346
        %p348 = pneg %p184
        %p349 = pneg %p181
        %p350 = scmp.lt.s32.totalorder %s25, 1
        %s351 = scalar_select %p350, %s25, 1
        %s352 = scalar_lea.vmem %s6, %s351
        %p353 = pneg %p210
        %p354 = pneg %p207
        %p355 = pneg %p238
        %p356 = pneg %p235
        %s357 = sand.u32 %s225, 1
        %s358 = scalar_lea.sflag [#allocation3], %s357
        %s359 = sand.u32 %s225, 1
        %s360 = smul.addr %s359, 8
        %s361 = scalar_lea.vmem [#allocation2], %s360
        %p362 = scmp.lt.s32.totalorder %s26, 0
        %s363 = scalar_select %p362, %s26, 0
        %s364 = smul.addr %s363, 8
        %s365 = scalar_lea.vmem %s0, %s364
        %p366 = scmp.lt.s32.totalorder %s25, 1
        %s367 = scalar_select %p366, %s25, 1
        %s368 = smul.addr %s367, 4
        %s369 = smul.addr %s368, 8
        %s370 = scalar_lea.vmem %s1, %s369
        %p371 = scmp.lt.s32.totalorder %s25, 1
        %s372 = scalar_select %p371, %s25, 1
        %s373 = scalar_lea.vmem %s2, %s372
        %p374 = scmp.lt.s32.totalorder %s25, 1
        %s375 = scalar_select %p374, %s25, 1
        %s376 = smul.addr %s375, 8
        %s377 = smul.addr %s376, 8
        %s378 = scalar_lea.vmem %s3, %s377
        %p379 = scmp.lt.s32.totalorder %s25, 1
        %s380 = scalar_select %p379, %s25, 1
        %s381 = scalar_lea.vmem %s4, %s380
        %p382 = scmp.lt.s32.totalorder %s25, 1
        %s383 = scalar_select %p382, %s25, 1
        %s384 = smul.addr %s383, 8
        %s385 = smul.addr %s384, 8
        %s386 = scalar_lea.vmem %s5, %s385
        %p387 = scmp.lt.s32.totalorder %s25, 1
        %s388 = scalar_select %p387, %s25, 1
        %s389 = scalar_lea.vmem %s6, %s388
        %v390 = vld [vmem:[%s365] sm:$0xff]
        %v391 = vld [vmem:[%s370] sm:$0xff]
        %v392 = vld [vmem:[%s370 + $0x8] sm:$0xff]
        %v393 = vld [vmem:[%s370 + $0x10] sm:$0xff]
        %v394 = vld [vmem:[%s370 + $0x18] sm:$0xff]
        %v395 = vld [vmem:[%s373] sm:$0x1]
        %v397 = vlaneseq
        %v398 = vshrl.u32 %v397, 7
        %v399 = vsub.s32 0, %v398
        %v400 = vrot.slane %v395, %v399
        %vm402 = vcmask 261120
        %v404 = vsel %vm402, %v390, 0
        %406 = vmatprep.subr.mxu0 0.0
        %407 = vmatpush1.msra.mxu0 %v391
        %408 = vmatprep.subr.mxu0 0.0
        %409 = vmatpush1.msra.mxu0 %v392
        %410 = vmatprep.subr.mxu0 0.0
        %411 = vmatpush1.msra.mxu0 %v393
        %412 = vmatprep.subr.mxu0 0.0
        %413 = vmatpush1.msra.mxu0 %v394
        %414 = vmatprep.subr.mxu0 0.0
        %415 = vmatpush1.msra.mxu0 0.0
        %416 = vmatprep.subr.mxu0 0.0
        %417 = vmatpush1.msra.mxu0 0.0
        %418 = vmatprep.subr.mxu0 0.0
        %419 = vmatpush1.msra.mxu0 0.0
        %420 = vmatprep.subr.mxu0 0.0
        %421 = vmatpush1.msra.mxu0 0.0
        %422 = vmatprep.subr.mxu0 0.0
        %423 = vmatpush1.msra.mxu0 0.0
        %424 = vmatprep.subr.mxu0 0.0
        %425 = vmatpush1.msra.mxu0 0.0
        %426 = vmatprep.subr.mxu0 0.0
        %427 = vmatpush1.msra.mxu0 0.0
        %428 = vmatprep.subr.mxu0 0.0
        %429 = vmatpush1.msra.mxu0 0.0
        %430 = vmatprep.subr.mxu0 0.0
        %431 = vmatpush1.msra.mxu0 0.0
        %432 = vmatprep.subr.mxu0 0.0
        %433 = vmatpush1.msra.mxu0 0.0
        %434 = vmatprep.subr.mxu0 0.0
        %435 = vmatpush1.msra.mxu0 0.0
        %436 = vmatprep.subr.mxu0 0.0
        %437 = vmatpush1.msra.mxu0 0.0
        %438 = vmatprep.subr.mxu0 0.0
        %439 = vmatpush1.msra.mxu0 0.0
        %440 = vmatprep.subr.mxu0 0.0
        %441 = vmatpush1.msra.mxu0 0.0
        %442 = vmatprep.subr.mxu0 0.0
        %443 = vmatpush1.msra.mxu0 0.0
        %444 = vmatprep.subr.mxu0 0.0
        %445 = vmatpush1.msra.mxu0 0.0
        %446 = vmatprep.subr.mxu0 0.0
        %447 = vmatpush1.msra.mxu0 0.0
        %448 = vmatprep.subr.mxu0 0.0
        %449 = vmatpush1.msra.mxu0 0.0
        %450 = vmatprep.subr.mxu0 0.0
        %451 = vmatpush1.msra.mxu0 0.0
        %452 = vmatprep.subr.mxu0 0.0
        %453 = vmatpush1.msra.mxu0 0.0
        %454 = vmatprep.subr.mxu0 0.0
        %455 = vmatpush1.msra.mxu0 0.0
        %456 = vmatprep.subr.mxu0 0.0
        %457 = vmatpush1.msra.mxu0 0.0
        %458 = vmatprep.subr.mxu0 0.0
        %459 = vmatpush1.msra.mxu0 0.0
        %460 = vmatprep.subr.mxu0 0.0
        %461 = vmatpush1.msra.mxu0 0.0
        %462 = vmatprep.subr.mxu0 0.0
        %463 = vmatpush1.msra.mxu0 0.0
        %464 = vmatprep.subr.mxu0 0.0
        %465 = vmatpush1.msra.mxu0 0.0
        %466 = vmatprep.subr.mxu0 0.0
        %467 = vmatpush1.msra.mxu0 0.0
        %468 = vmatprep.subr.mxu0 0.0
        %469 = vmatpush1.msra.mxu0 0.0
        %470 = vmatprep.mubr.f32.mxu0 0.0
        %471 = vmatmul.mubr.f32.gmra.mrb[0].mxu0 %v404
        %v472 = vpop.f32.mrb[0].mxu0
        %v473 = vadd.f32 %v400, %v472
        %v474 = vpop.f32.mrb[0].mxu0
        %475 = vdwg.mxu0
        %vm476 = vcmp.gt.f32.partialorder %v473, 0.0
        %v477 = vmul.f32 %v473, 1.442695
        %v478 = vpow.pop %v477
        %v479 = vsub.f32 %v478, 1.0
        %v480 = vsel %vm476, %v473, %v479
        %v481 = vld [vmem:[%s378] sm:$0xff]
        %v482 = vld [vmem:[%s378 + $0x8] sm:$0xff]
        %v483 = vld [vmem:[%s378 + $0x10] sm:$0xff]
        %v484 = vld [vmem:[%s378 + $0x18] sm:$0xff]
        %v485 = vld [vmem:[%s378 + $0x20] sm:$0xff]
        %v486 = vld [vmem:[%s378 + $0x28] sm:$0xff]
        %v487 = vld [vmem:[%s378 + $0x30] sm:$0xff]
        %v488 = vld [vmem:[%s378 + $0x38] sm:$0xff]
        %v489 = vld [vmem:[%s381] sm:$0x1]
        %v491 = vlaneseq
        %v492 = vshrl.u32 %v491, 7
        %v493 = vsub.s32 0, %v492
        %v494 = vrot.slane %v489, %v493
        %vm496 = vcmask 523264
        %v498 = vsel %vm496, %v480, 0
        %500 = vmatprep.subr.mxu0 0.0
        %501 = vmatpush1.msra.mxu0 %v481
        %502 = vmatprep.subr.mxu0 0.0
        %503 = vmatpush1.msra.mxu0 %v482
        %504 = vmatprep.subr.mxu0 0.0
        %505 = vmatpush1.msra.mxu0 %v483
        %506 = vmatprep.subr.mxu0 0.0
        %507 = vmatpush1.msra.mxu0 %v484
        %508 = vmatprep.subr.mxu0 0.0
        %509 = vmatpush1.msra.mxu0 %v485
        %510 = vmatprep.subr.mxu0 0.0
        %511 = vmatpush1.msra.mxu0 %v486
        %512 = vmatprep.subr.mxu0 0.0
        %513 = vmatpush1.msra.mxu0 %v487
        %514 = vmatprep.subr.mxu0 0.0
        %515 = vmatpush1.msra.mxu0 %v488
        %516 = vmatprep.subr.mxu0 0.0
        %517 = vmatpush1.msra.mxu0 0.0
        %518 = vmatprep.subr.mxu0 0.0
        %519 = vmatpush1.msra.mxu0 0.0
        %520 = vmatprep.subr.mxu0 0.0
        %521 = vmatpush1.msra.mxu0 0.0
        %522 = vmatprep.subr.mxu0 0.0
        %523 = vmatpush1.msra.mxu0 0.0
        %524 = vmatprep.subr.mxu0 0.0
        %525 = vmatpush1.msra.mxu0 0.0
        %526 = vmatprep.subr.mxu0 0.0
        %527 = vmatpush1.msra.mxu0 0.0
        %528 = vmatprep.subr.mxu0 0.0
        %529 = vmatpush1.msra.mxu0 0.0
        %530 = vmatprep.subr.mxu0 0.0
        %531 = vmatpush1.msra.mxu0 0.0
        %532 = vmatprep.subr.mxu0 0.0
        %533 = vmatpush1.msra.mxu0 0.0
        %534 = vmatprep.subr.mxu0 0.0
        %535 = vmatpush1.msra.mxu0 0.0
        %536 = vmatprep.subr.mxu0 0.0
        %537 = vmatpush1.msra.mxu0 0.0
        %538 = vmatprep.subr.mxu0 0.0
        %539 = vmatpush1.msra.mxu0 0.0
        %540 = vmatprep.subr.mxu0 0.0
        %541 = vmatpush1.msra.mxu0 0.0
        %542 = vmatprep.subr.mxu0 0.0
        %543 = vmatpush1.msra.mxu0 0.0
        %544 = vmatprep.subr.mxu0 0.0
        %545 = vmatpush1.msra.mxu0 0.0
        %546 = vmatprep.subr.mxu0 0.0
        %547 = vmatpush1.msra.mxu0 0.0
        %548 = vmatprep.subr.mxu0 0.0
        %549 = vmatpush1.msra.mxu0 0.0
        %550 = vmatprep.subr.mxu0 0.0
        %551 = vmatpush1.msra.mxu0 0.0
        %552 = vmatprep.subr.mxu0 0.0
        %553 = vmatpush1.msra.mxu0 0.0
        %554 = vmatprep.subr.mxu0 0.0
        %555 = vmatpush1.msra.mxu0 0.0
        %556 = vmatprep.subr.mxu0 0.0
        %557 = vmatpush1.msra.mxu0 0.0
        %558 = vmatprep.subr.mxu0 0.0
        %559 = vmatpush1.msra.mxu0 0.0
        %560 = vmatprep.subr.mxu0 0.0
        %561 = vmatpush1.msra.mxu0 0.0
        %562 = vmatprep.subr.mxu0 0.0
        %563 = vmatpush1.msra.mxu0 0.0
        %564 = vmatprep.mubr.f32.mxu0 0.0
        %565 = vmatmul.mubr.f32.gmra.mrb[0].mxu0 %v498
        %v566 = vpop.f32.mrb[0].mxu0
        %v567 = vadd.f32 %v494, %v566
        %v568 = vpop.f32.mrb[0].mxu0
        %569 = vdwg.mxu0
        %vm570 = vcmp.gt.f32.partialorder %v567, 0.0
        %v571 = vmul.f32 %v567, 1.442695
        %v572 = vpow.pop %v571
        %v573 = vsub.f32 %v572, 1.0
        %v574 = vsel %vm570, %v567, %v573
        %v575 = vld [vmem:[%s386] sm:$0xff]
        %v576 = vld [vmem:[%s386 + $0x8] sm:$0xff]
        %v577 = vld [vmem:[%s386 + $0x10] sm:$0xff]
        %v578 = vld [vmem:[%s386 + $0x18] sm:$0xff]
        %v579 = vld [vmem:[%s386 + $0x20] sm:$0xff]
        %v580 = vld [vmem:[%s386 + $0x28] sm:$0xff]
        %v581 = vld [vmem:[%s386 + $0x30] sm:$0xff]
        %v582 = vld [vmem:[%s386 + $0x38] sm:$0xff]
        %v583 = vld [vmem:[%s389] sm:$0x1]
        %v585 = vlaneseq
        %v586 = vshrl.u32 %v585, 7
        %v587 = vsub.s32 0, %v586
        %v588 = vrot.slane %v583, %v587
        %v591 = vsel %vm496, %v574, 0
        %593 = vmatprep.subr.mxu0 0.0
        %594 = vmatpush1.msra.mxu0 %v575
        %595 = vmatprep.subr.mxu0 0.0
        %596 = vmatpush1.msra.mxu0 %v576
        %597 = vmatprep.subr.mxu0 0.0
        %598 = vmatpush1.msra.mxu0 %v577
        %599 = vmatprep.subr.mxu0 0.0
        %600 = vmatpush1.msra.mxu0 %v578
        %601 = vmatprep.subr.mxu0 0.0
        %602 = vmatpush1.msra.mxu0 %v579
        %603 = vmatprep.subr.mxu0 0.0
        %604 = vmatpush1.msra.mxu0 %v580
        %605 = vmatprep.subr.mxu0 0.0
        %606 = vmatpush1.msra.mxu0 %v581
        %607 = vmatprep.subr.mxu0 0.0
        %608 = vmatpush1.msra.mxu0 %v582
        %609 = vmatprep.subr.mxu0 0.0
        %610 = vmatpush1.msra.mxu0 0.0
        %611 = vmatprep.subr.mxu0 0.0
        %612 = vmatpush1.msra.mxu0 0.0
        %613 = vmatprep.subr.mxu0 0.0
        %614 = vmatpush1.msra.mxu0 0.0
        %615 = vmatprep.subr.mxu0 0.0
        %616 = vmatpush1.msra.mxu0 0.0
        %617 = vmatprep.subr.mxu0 0.0
        %618 = vmatpush1.msra.mxu0 0.0
        %619 = vmatprep.subr.mxu0 0.0
        %620 = vmatpush1.msra.mxu0 0.0
        %621 = vmatprep.subr.mxu0 0.0
        %622 = vmatpush1.msra.mxu0 0.0
        %623 = vmatprep.subr.mxu0 0.0
        %624 = vmatpush1.msra.mxu0 0.0
        %625 = vmatprep.subr.mxu0 0.0
        %626 = vmatpush1.msra.mxu0 0.0
        %627 = vmatprep.subr.mxu0 0.0
        %628 = vmatpush1.msra.mxu0 0.0
        %629 = vmatprep.subr.mxu0 0.0
        %630 = vmatpush1.msra.mxu0 0.0
        %631 = vmatprep.subr.mxu0 0.0
        %632 = vmatpush1.msra.mxu0 0.0
        %633 = vmatprep.subr.mxu0 0.0
        %634 = vmatpush1.msra.mxu0 0.0
        %635 = vmatprep.subr.mxu0 0.0
        %636 = vmatpush1.msra.mxu0 0.0
        %637 = vmatprep.subr.mxu0 0.0
        %638 = vmatpush1.msra.mxu0 0.0
        %639 = vmatprep.subr.mxu0 0.0
        %640 = vmatpush1.msra.mxu0 0.0
        %641 = vmatprep.subr.mxu0 0.0
        %642 = vmatpush1.msra.mxu0 0.0
        %643 = vmatprep.subr.mxu0 0.0
        %644 = vmatpush1.msra.mxu0 0.0
        %645 = vmatprep.subr.mxu0 0.0
        %646 = vmatpush1.msra.mxu0 0.0
        %647 = vmatprep.subr.mxu0 0.0
        %648 = vmatpush1.msra.mxu0 0.0
        %649 = vmatprep.subr.mxu0 0.0
        %650 = vmatpush1.msra.mxu0 0.0
        %651 = vmatprep.subr.mxu0 0.0
        %652 = vmatpush1.msra.mxu0 0.0
        %653 = vmatprep.subr.mxu0 0.0
        %654 = vmatpush1.msra.mxu0 0.0
        %655 = vmatprep.subr.mxu0 0.0
        %656 = vmatpush1.msra.mxu0 0.0
        %657 = vmatprep.mubr.f32.mxu0 0.0
        %658 = vmatmul.mubr.f32.gmra.mrb[0].mxu0 %v591
        %v659 = vpop.f32.mrb[0].mxu0
        %v660 = vadd.f32 %v588, %v659
        %v661 = vpop.f32.mrb[0].mxu0
        %662 = vdwg.mxu0
        %663 = vst.msk [vmem:[%s361] sm:$0xff] %vm402, %v660
        %s664 = sand.u32 %s225, 1
        %s665 = scalar_lea.sflag [#allocation3], %s664
        %s666 = sand.u32 %s225, 1
        %s667 = smul.addr %s666, 8
        %s668 = scalar_lea.vmem [#allocation2], %s667
        // Predicated region
        $region49: #{tpu_custom_call.1} parent=47 // pred_check
          %p669 = pneg %p235
        $region50: #{tpu_custom_call.1} parent=47 // pred_check_branch
          %671 = sbr.rel (%p669) target = $region52
        $region51: #{tpu_custom_call.1} parent=47 // pred_region
          %s673 = ssub.s32 128, 128
          %674 = vsyncadd %s665, %s673
          %s675 = sadd.s32 %s26, %s25
          %s676 = smul.addr %s675, 128
          %s677 = scalar_lea.hbm %s7, %s676
          %s679 = sshll.u32 %s668, 4
          %s680 = int_to_ptr.vmem [resolvable:$true] %s679
          %682 = dma.vmem_to_hbm [thread:$0]  %s680, 128, %s677, %s665
        $region52: #{tpu_custom_call.1} parent=47 // pred_fallthru
          _
      $region48: #{tpu_custom_call.1} parent=5 // pred_fallthru
        _
      %p683 = scmp.le.s32.totalorder 2, %s16
      // Predicated region
      $region53: #{tpu_custom_call.1} parent=5 // pred_check
        %p684 = pneg %p683
      $region54: #{tpu_custom_call.1} parent=5 // pred_check_branch
        %686 = sbr.rel (%p684) target = $region56
      $region55: #{tpu_custom_call.1} parent=5 // pred_region
        %s687 = ssub.s32 %s16, 2
        // Predicated region
        $region57: #{tpu_custom_call.1} parent=55 // pred_check
          %p688 = pneg %p241
        $region58: #{tpu_custom_call.1} parent=55 // pred_check_branch
          %690 = sbr.rel (%p688) target = $region60
        $region59: #{tpu_custom_call.1} parent=55 // pred_region
          %s691 = sand.u32 %s226, 1
          %s692 = scalar_lea.sflag [#allocation3], %s691
          %s693 = sand.u32 %s226, 1
          %s694 = smul.addr %s693, 8
          %s695 = scalar_lea.vmem [#allocation2], %s694
          %696 = dma.done %s692, 128
        $region60: #{tpu_custom_call.1} parent=55 // pred_fallthru
          _
      $region56: #{tpu_custom_call.1} parent=5 // pred_fallthru
        _
    $region6: #{tpu_custom_call.1} parent=1 // loop_footer
      %s20 = sadd.s32 1, %s16
    $region7: #{tpu_custom_call.1} parent=1 // loop_footer_branch
      %15 = sbr.rel target = $region3
    $region8: #{tpu_custom_call.1} parent=1 // loop_exit
      _
    %697 = vsyncpa [#allocation3], 1
    %s698 = scalar_lea.sflag [#allocation3], 1
    %699 = vsyncpa %s698, 1

</llo_original>
